<compile_context>
chip_gen: v6e
topology: v6e:2x2x1
jax: 0.10.0
libtpu: 0.0.40
codegen_flags: <defaults>
</compile_context>

<pallas_src>
from functools import partial

import jax
import jax.numpy as jnp
from jax.experimental import pallas as pl
from jax.experimental.pallas import tpu as pltpu


def _dwconv_kernel(xp_ref, dww_ref, w2_ref, wr_ref, bias_ref, o_ref,
                   *, matmul_dtype):
    # xp_ref  : (1, H+2, W+2, Cin)  zero-padded NHWC input, one batch element
    # dww_ref : (9, Cin)            depthwise 3x3 weights, tap k = ki*3 + kj
    # w2_ref  : (Cin, Cout)         1x1 pointwise weights
    # wr_ref  : (Cin, Cout)         1x1 residual weights
    # bias_ref: (1, Cout)           combined bias  W2 @ b1 + b2 + br
    # o_ref   : (1, TH, W, Cout)    output row tile (NHWC)
    th = o_ref.shape[1]
    w_out = o_ref.shape[2]
    cin = xp_ref.shape[3]

    # First padded input row needed by this output row tile (2-row halo).
    row0 = pl.multiple_of(pl.program_id(1) * th, th)

    dww = dww_ref[...].astype(jnp.float32)      # (9, Cin)

    def tap(ki, kj):
        # (1, TH, W, Cin) shifted window, read straight from the ref.
        return xp_ref[:, pl.ds(row0 + ki, th), pl.ds(kj, w_out), :].astype(jnp.float32)

    # Depthwise 3x3 (stride 1, pad 1): 9 shifted FMAs on the VPU.  The first
    # tap initializes the accumulator (no zero fill); the center tap is kept
    # around for the residual 1x1.  conv1's bias is folded into bias_ref.
    acc = None
    center = None
    for ki in range(3):
        for kj in range(3):
            t = tap(ki, kj)
            if ki == 1 and kj == 1:
                center = t
            contrib = t * dww[ki * 3 + kj]
            acc = contrib if acc is None else acc + contrib

    m = th * w_out
    # (1, TH, W, C) -> (TH*W, C): leading dims collapse, lane dim unchanged.
    dw2d = acc.reshape(m, cin).astype(matmul_dtype)
    xc2d = center.reshape(m, cin).astype(matmul_dtype)

    # 1x1 pointwise + 1x1 residual as channel matmuls on the MXU, accumulated
    # in fp32 with one combined bias add.
    y = jnp.dot(dw2d, w2_ref[...].astype(matmul_dtype),
                preferred_element_type=jnp.float32)
    y = y + jnp.dot(xc2d, wr_ref[...].astype(matmul_dtype),
                    preferred_element_type=jnp.float32)
    y = y + bias_ref[...].astype(jnp.float32)

    o_ref[...] = y.reshape(o_ref.shape).astype(o_ref.dtype)


def _pick_row_tile(height, width, cin, cout, budget_bytes=8 * 1024 * 1024):
    """Largest divisor of `height` whose fp32 per-tile working set fits the budget.

    Accounts for the double-buffered resident padded image plus per-tile fp32
    intermediates.  The budget is conservative (well under the default scoped
    VMEM of v5e / v6e / v7x), so the same choice is safe on all generations.
    """
    img_bytes = 2 * (height + 2) * (width + 2) * cin * 4
    per_row = 4 * width * (5 * cin + 3 * cout)
    avail = max(budget_bytes - img_bytes, per_row)
    th = max(1, min(height, avail // max(per_row, 1)))
    while height % th:
        th -= 1
    return th


def depthwise_conv_forward(x_nchw, params, *, row_tile=None,
                           matmul_dtype=jnp.float32):
    """Forward of DepthWise_Conv (use_res=True).  Input/output are NCHW.

    Set matmul_dtype=jnp.bfloat16 on v5e/v6e to avoid multi-pass fp32 MXU
    emulation when tolerance allows (accumulation stays fp32).
    """
    dw_w = params["dw_w"]   # (Cin, 1, 3, 3)    conv1.weight (groups=Cin)
    dw_b = params["dw_b"]   # (Cin,)            conv1.bias
    w2 = params["w2"]       # (Cout, Cin, 1, 1) conv2.weight
    b2 = params["b2"]       # (Cout,)
    wr = params["wr"]       # (Cout, Cin, 1, 1) res.weight
    br = params["br"]       # (Cout,)

    n, cin, height, width = x_nchw.shape
    cout = w2.shape[0]

    # NHWC + zero halo for the padding=1 depthwise.
    # TODO(synk): fold the pad and the NCHW<->NHWC transposes into the kernel
    # (edge masking + halo DMA) to drop the remaining HBM copy passes, and add
    # a halo-DMA path for images too large to keep resident in VMEM.
    x = jnp.transpose(x_nchw, (0, 2, 3, 1))
    xp = jnp.pad(x, ((0, 0), (1, 1), (1, 1), (0, 0)))

    dww = jnp.transpose(dw_w[:, 0], (1, 2, 0)).reshape(9, cin)      # (9, Cin)
    w2mat = w2[:, :, 0, 0]                                          # (Cout, Cin)
    wrmat = wr[:, :, 0, 0]                                          # (Cout, Cin)
    w2m = jnp.transpose(w2mat, (1, 0))                              # (Cin, Cout)
    wrm = jnp.transpose(wrmat, (1, 0))                              # (Cin, Cout)
    # Fold conv1's bias through conv2: conv2(dw + b1) = conv2(dw) + W2 @ b1.
    bias = (w2mat.astype(jnp.float32) @ dw_b.astype(jnp.float32)
            + b2.astype(jnp.float32) + br.astype(jnp.float32)).reshape(1, cout)

    th = _pick_row_tile(height, width, cin, cout) if row_tile is None else row_tile
    assert height % th == 0, (height, th)
    n_tiles = height // th

    flops = int(n * height * width * (2 * 9 * cin + 2 * 2 * cin * cout))
    bytes_accessed = int(xp.size * xp.dtype.itemsize
                         + (dww.size + w2m.size + wrm.size + bias.size) * 4
                         + n * height * width * cout * x.dtype.itemsize)

    out = pl.pallas_call(
        partial(_dwconv_kernel, matmul_dtype=matmul_dtype),
        out_shape=jax.ShapeDtypeStruct((n, height, width, cout), x.dtype),
        grid=(n, n_tiles),
        in_specs=[
            # Whole padded image per batch element: block index is constant
            # along the row-tile axis, so it is fetched once per image and the
            # row tiles read it with a 2-row halo via pl.ds inside the kernel.
            pl.BlockSpec((1, height + 2, width + 2, cin), lambda b, t: (b, 0, 0, 0)),
            pl.BlockSpec((9, cin), lambda b, t: (0, 0)),
            pl.BlockSpec((cin, cout), lambda b, t: (0, 0)),
            pl.BlockSpec((cin, cout), lambda b, t: (0, 0)),
            pl.BlockSpec((1, cout), lambda b, t: (0, 0)),
        ],
        out_specs=pl.BlockSpec((1, th, width, cout), lambda b, t: (b, t, 0, 0)),
        compiler_params=pltpu.CompilerParams(
            dimension_semantics=("parallel", "parallel")),
        cost_estimate=pl.CostEstimate(flops=flops, transcendentals=0,
                                      bytes_accessed=bytes_accessed),
    )(xp, dww, w2m, wrm, bias)

    # Back to NCHW (single transpose pass; output was never lane-padded).
    return jnp.transpose(out, (0, 3, 1, 2))


def reference_forward(x, params):
    """Plain-JAX reference (mirrors the PyTorch forward in NCHW)."""
    dn = ("NCHW", "OIHW", "NCHW")
    dw = jax.lax.conv_general_dilated(
        x, params["dw_w"], (1, 1), ((1, 1), (1, 1)),
        feature_group_count=x.shape[1], dimension_numbers=dn)
    dw = dw + params["dw_b"][None, :, None, None]
    y = jax.lax.conv_general_dilated(dw, params["w2"], (1, 1), "VALID",
                                     dimension_numbers=dn)
    y = y + params["b2"][None, :, None, None]
    r = jax.lax.conv_general_dilated(x, params["wr"], (1, 1), "VALID",
                                     dimension_numbers=dn)
    r = r + params["br"][None, :, None, None]
    return y + r


if __name__ == "__main__":
    N, Cin, Cout, H, W = 2, 4, 8, 16, 16

    key = jax.random.PRNGKey(0)
    k = jax.random.split(key, 8)
    params = {
        "dw_w": 0.1 * jax.random.normal(k[0], (Cin, 1, 3, 3), jnp.float32),
        "dw_b": 0.1 * jax.random.normal(k[1], (Cin,), jnp.float32),
        "w2":   0.1 * jax.random.normal(k[2], (Cout, Cin, 1, 1), jnp.float32),
        "b2":   0.1 * jax.random.normal(k[3], (Cout,), jnp.float32),
        "wr":   0.1 * jax.random.normal(k[4], (Cout, Cin, 1, 1), jnp.float32),
        "br":   0.1 * jax.random.normal(k[5], (Cout,), jnp.float32),
    }
    x = jax.random.normal(k[6], (N, Cin, H, W), jnp.float32)

    ref = jax.block_until_ready(reference_forward(x, params))

    # Multi-row-tile path (2 tiles of 8 rows, exercises the halo slicing).
    fwd_tiled = jax.jit(partial(depthwise_conv_forward, row_tile=8))
    out = jax.block_until_ready(fwd_tiled(x, params))
    assert out.shape == (N, Cout, H, W), out.shape
    assert jnp.allclose(out, ref, atol=1e-4, rtol=1e-4), \
        f"tiled: max abs err = {jnp.max(jnp.abs(out - ref))}"

    # Auto tile-size path.
    out_auto = jax.block_until_ready(jax.jit(depthwise_conv_forward)(x, params))
    assert jnp.allclose(out_auto, ref, atol=1e-4, rtol=1e-4), \
        f"auto: max abs err = {jnp.max(jnp.abs(out_auto - ref))}"

    print("KERNEL_OK")
</pallas_src>

<mosaic_0001>
module attributes {stable_mosaic.version = 11 : i64} {
  func.func @_dwconv_kernel(%arg0: i32, %arg1: i32, %arg2: memref<1x18x18x4xf32, #tpu.memory_space<vmem>>, %arg3: memref<9x4xf32, #tpu.memory_space<vmem>>, %arg4: memref<4x8xf32, #tpu.memory_space<vmem>>, %arg5: memref<4x8xf32, #tpu.memory_space<vmem>>, %arg6: memref<1x8xf32, #tpu.memory_space<vmem>>, %arg7: memref<1x8x16x8xf32, #tpu.memory_space<vmem>>) attributes {dimension_semantics = [#tpu.dimension_semantics<parallel>, #tpu.dimension_semantics<parallel>], iteration_bounds = array<i64: 2, 2>, scalar_prefetch = 0 : i64, scratch_operands = 0 : i64, tpu.core_type = #tpu.core_type<tc>, window_params = [{transform_indices = @transform_0, window_bounds = array<i64: 1, 18, 18, 4>}, {pipeline_mode = #tpu.pipeline_mode<synchronous>, transform_indices = @transform_1, window_bounds = array<i64: 9, 4>}, {pipeline_mode = #tpu.pipeline_mode<synchronous>, transform_indices = @transform_2, window_bounds = array<i64: 4, 8>}, {pipeline_mode = #tpu.pipeline_mode<synchronous>, transform_indices = @transform_3, window_bounds = array<i64: 4, 8>}, {pipeline_mode = #tpu.pipeline_mode<synchronous>, transform_indices = @transform_4, window_bounds = array<i64: 1, 8>}, {transform_indices = @transform_5, window_bounds = array<i64: 1, 8, 16, 8>}]} {
    %c8_i32 = arith.constant 8 : i32
    %0 = arith.muli %arg1, %c8_i32 : i32
    %1 = tpu.assume_multiple %0, 8 : i32
    %c0 = arith.constant 0 : index
    %c0_0 = arith.constant 0 : index
    %2 = vector.load %arg3[%c0, %c0_0] : memref<9x4xf32, #tpu.memory_space<vmem>>, vector<9x4xf32>
    %c0_i32 = arith.constant 0 : i32
    %3 = arith.addi %1, %c0_i32 : i32
    %c0_1 = arith.constant 0 : index
    %4 = arith.index_cast %3 : i32 to index
    %c0_2 = arith.constant 0 : index
    %c0_3 = arith.constant 0 : index
    %5 = vector.load %arg2[%c0_1, %4, %c0_2, %c0_3] : memref<1x18x18x4xf32, #tpu.memory_space<vmem>>, vector<1x8x16x4xf32>
    %6 = vector.extract_strided_slice %2 {offsets = [0, 0], sizes = [1, 4], strides = [1, 1]} : vector<9x4xf32> to vector<1x4xf32>
    %7 = vector.shape_cast %6 : vector<1x4xf32> to vector<4xf32>
    %8 = vector.shape_cast %7 : vector<4xf32> to vector<1x1x1x4xf32>
    %9 = vector.broadcast %8 : vector<1x1x1x4xf32> to vector<1x8x16x4xf32>
    %10 = arith.mulf %5, %9 : vector<1x8x16x4xf32>
    %c0_i32_4 = arith.constant 0 : i32
    %11 = arith.addi %1, %c0_i32_4 : i32
    %c0_5 = arith.constant 0 : index
    %12 = arith.index_cast %11 : i32 to index
    %c1 = arith.constant 1 : index
    %c0_6 = arith.constant 0 : index
    %13 = vector.load %arg2[%c0_5, %12, %c1, %c0_6] : memref<1x18x18x4xf32, #tpu.memory_space<vmem>>, vector<1x8x16x4xf32>
    %14 = vector.extract_strided_slice %2 {offsets = [1, 0], sizes = [1, 4], strides = [1, 1]} : vector<9x4xf32> to vector<1x4xf32>
    %15 = vector.shape_cast %14 : vector<1x4xf32> to vector<4xf32>
    %16 = vector.shape_cast %15 : vector<4xf32> to vector<1x1x1x4xf32>
    %17 = vector.broadcast %16 : vector<1x1x1x4xf32> to vector<1x8x16x4xf32>
    %18 = arith.mulf %13, %17 : vector<1x8x16x4xf32>
    %19 = arith.addf %10, %18 : vector<1x8x16x4xf32>
    %c0_i32_7 = arith.constant 0 : i32
    %20 = arith.addi %1, %c0_i32_7 : i32
    %c0_8 = arith.constant 0 : index
    %21 = arith.index_cast %20 : i32 to index
    %c2 = arith.constant 2 : index
    %c0_9 = arith.constant 0 : index
    %22 = vector.load %arg2[%c0_8, %21, %c2, %c0_9] : memref<1x18x18x4xf32, #tpu.memory_space<vmem>>, vector<1x8x16x4xf32>
    %23 = vector.extract_strided_slice %2 {offsets = [2, 0], sizes = [1, 4], strides = [1, 1]} : vector<9x4xf32> to vector<1x4xf32>
    %24 = vector.shape_cast %23 : vector<1x4xf32> to vector<4xf32>
    %25 = vector.shape_cast %24 : vector<4xf32> to vector<1x1x1x4xf32>
    %26 = vector.broadcast %25 : vector<1x1x1x4xf32> to vector<1x8x16x4xf32>
    %27 = arith.mulf %22, %26 : vector<1x8x16x4xf32>
    %28 = arith.addf %19, %27 : vector<1x8x16x4xf32>
    %c1_i32 = arith.constant 1 : i32
    %29 = arith.addi %1, %c1_i32 : i32
    %c0_10 = arith.constant 0 : index
    %30 = arith.index_cast %29 : i32 to index
    %c0_11 = arith.constant 0 : index
    %c0_12 = arith.constant 0 : index
    %31 = vector.load %arg2[%c0_10, %30, %c0_11, %c0_12] : memref<1x18x18x4xf32, #tpu.memory_space<vmem>>, vector<1x8x16x4xf32>
    %32 = vector.extract_strided_slice %2 {offsets = [3, 0], sizes = [1, 4], strides = [1, 1]} : vector<9x4xf32> to vector<1x4xf32>
    %33 = vector.shape_cast %32 : vector<1x4xf32> to vector<4xf32>
    %34 = vector.shape_cast %33 : vector<4xf32> to vector<1x1x1x4xf32>
    %35 = vector.broadcast %34 : vector<1x1x1x4xf32> to vector<1x8x16x4xf32>
    %36 = arith.mulf %31, %35 : vector<1x8x16x4xf32>
    %37 = arith.addf %28, %36 : vector<1x8x16x4xf32>
    %c1_i32_13 = arith.constant 1 : i32
    %38 = arith.addi %1, %c1_i32_13 : i32
    %c0_14 = arith.constant 0 : index
    %39 = arith.index_cast %38 : i32 to index
    %c1_15 = arith.constant 1 : index
    %c0_16 = arith.constant 0 : index
    %40 = vector.load %arg2[%c0_14, %39, %c1_15, %c0_16] : memref<1x18x18x4xf32, #tpu.memory_space<vmem>>, vector<1x8x16x4xf32>
    %41 = vector.extract_strided_slice %2 {offsets = [4, 0], sizes = [1, 4], strides = [1, 1]} : vector<9x4xf32> to vector<1x4xf32>
    %42 = vector.shape_cast %41 : vector<1x4xf32> to vector<4xf32>
    %43 = vector.shape_cast %42 : vector<4xf32> to vector<1x1x1x4xf32>
    %44 = vector.broadcast %43 : vector<1x1x1x4xf32> to vector<1x8x16x4xf32>
    %45 = arith.mulf %40, %44 : vector<1x8x16x4xf32>
    %46 = arith.addf %37, %45 : vector<1x8x16x4xf32>
    %c1_i32_17 = arith.constant 1 : i32
    %47 = arith.addi %1, %c1_i32_17 : i32
    %c0_18 = arith.constant 0 : index
    %48 = arith.index_cast %47 : i32 to index
    %c2_19 = arith.constant 2 : index
    %c0_20 = arith.constant 0 : index
    %49 = vector.load %arg2[%c0_18, %48, %c2_19, %c0_20] : memref<1x18x18x4xf32, #tpu.memory_space<vmem>>, vector<1x8x16x4xf32>
    %50 = vector.extract_strided_slice %2 {offsets = [5, 0], sizes = [1, 4], strides = [1, 1]} : vector<9x4xf32> to vector<1x4xf32>
    %51 = vector.shape_cast %50 : vector<1x4xf32> to vector<4xf32>
    %52 = vector.shape_cast %51 : vector<4xf32> to vector<1x1x1x4xf32>
    %53 = vector.broadcast %52 : vector<1x1x1x4xf32> to vector<1x8x16x4xf32>
    %54 = arith.mulf %49, %53 : vector<1x8x16x4xf32>
    %55 = arith.addf %46, %54 : vector<1x8x16x4xf32>
    %c2_i32 = arith.constant 2 : i32
    %56 = arith.addi %1, %c2_i32 : i32
    %c0_21 = arith.constant 0 : index
    %57 = arith.index_cast %56 : i32 to index
    %c0_22 = arith.constant 0 : index
    %c0_23 = arith.constant 0 : index
    %58 = vector.load %arg2[%c0_21, %57, %c0_22, %c0_23] : memref<1x18x18x4xf32, #tpu.memory_space<vmem>>, vector<1x8x16x4xf32>
    %59 = vector.extract_strided_slice %2 {offsets = [6, 0], sizes = [1, 4], strides = [1, 1]} : vector<9x4xf32> to vector<1x4xf32>
    %60 = vector.shape_cast %59 : vector<1x4xf32> to vector<4xf32>
    %61 = vector.shape_cast %60 : vector<4xf32> to vector<1x1x1x4xf32>
    %62 = vector.broadcast %61 : vector<1x1x1x4xf32> to vector<1x8x16x4xf32>
    %63 = arith.mulf %58, %62 : vector<1x8x16x4xf32>
    %64 = arith.addf %55, %63 : vector<1x8x16x4xf32>
    %c2_i32_24 = arith.constant 2 : i32
    %65 = arith.addi %1, %c2_i32_24 : i32
    %c0_25 = arith.constant 0 : index
    %66 = arith.index_cast %65 : i32 to index
    %c1_26 = arith.constant 1 : index
    %c0_27 = arith.constant 0 : index
    %67 = vector.load %arg2[%c0_25, %66, %c1_26, %c0_27] : memref<1x18x18x4xf32, #tpu.memory_space<vmem>>, vector<1x8x16x4xf32>
    %68 = vector.extract_strided_slice %2 {offsets = [7, 0], sizes = [1, 4], strides = [1, 1]} : vector<9x4xf32> to vector<1x4xf32>
    %69 = vector.shape_cast %68 : vector<1x4xf32> to vector<4xf32>
    %70 = vector.shape_cast %69 : vector<4xf32> to vector<1x1x1x4xf32>
    %71 = vector.broadcast %70 : vector<1x1x1x4xf32> to vector<1x8x16x4xf32>
    %72 = arith.mulf %67, %71 : vector<1x8x16x4xf32>
    %73 = arith.addf %64, %72 : vector<1x8x16x4xf32>
    %c2_i32_28 = arith.constant 2 : i32
    %74 = arith.addi %1, %c2_i32_28 : i32
    %c0_29 = arith.constant 0 : index
    %75 = arith.index_cast %74 : i32 to index
    %c2_30 = arith.constant 2 : index
    %c0_31 = arith.constant 0 : index
    %76 = vector.load %arg2[%c0_29, %75, %c2_30, %c0_31] : memref<1x18x18x4xf32, #tpu.memory_space<vmem>>, vector<1x8x16x4xf32>
    %77 = vector.extract_strided_slice %2 {offsets = [8, 0], sizes = [1, 4], strides = [1, 1]} : vector<9x4xf32> to vector<1x4xf32>
    %78 = vector.shape_cast %77 : vector<1x4xf32> to vector<4xf32>
    %79 = vector.shape_cast %78 : vector<4xf32> to vector<1x1x1x4xf32>
    %80 = vector.broadcast %79 : vector<1x1x1x4xf32> to vector<1x8x16x4xf32>
    %81 = arith.mulf %76, %80 : vector<1x8x16x4xf32>
    %82 = arith.addf %73, %81 : vector<1x8x16x4xf32>
    %83 = vector.shape_cast %82 : vector<1x8x16x4xf32> to vector<128x4xf32>
    %84 = vector.shape_cast %40 : vector<1x8x16x4xf32> to vector<128x4xf32>
    %c0_32 = arith.constant 0 : index
    %c0_33 = arith.constant 0 : index
    %85 = vector.load %arg4[%c0_32, %c0_33] : memref<4x8xf32, #tpu.memory_space<vmem>>, vector<4x8xf32>
    %cst = arith.constant dense<0.000000e+00> : vector<128x8xf32>
    %86 = tpu.matmul %83, %85, %cst {dimension_numbers = #tpu.dot_dimension_numbers<[1], [0], [0], [1], [0, 0, 1, 1], [], []>} : vector<128x4xf32>, vector<4x8xf32>, vector<128x8xf32> -> vector<128x8xf32>
    %c0_34 = arith.constant 0 : index
    %c0_35 = arith.constant 0 : index
    %87 = vector.load %arg5[%c0_34, %c0_35] : memref<4x8xf32, #tpu.memory_space<vmem>>, vector<4x8xf32>
    %cst_36 = arith.constant dense<0.000000e+00> : vector<128x8xf32>
    %88 = tpu.matmul %84, %87, %cst_36 {dimension_numbers = #tpu.dot_dimension_numbers<[1], [0], [0], [1], [0, 0, 1, 1], [], []>} : vector<128x4xf32>, vector<4x8xf32>, vector<128x8xf32> -> vector<128x8xf32>
    %89 = arith.addf %86, %88 : vector<128x8xf32>
    %c0_37 = arith.constant 0 : index
    %c0_38 = arith.constant 0 : index
    %90 = vector.load %arg6[%c0_37, %c0_38] : memref<1x8xf32, #tpu.memory_space<vmem>>, vector<1x8xf32>
    %91 = vector.broadcast %90 : vector<1x8xf32> to vector<128x8xf32>
    %92 = arith.addf %89, %91 : vector<128x8xf32>
    %93 = vector.shape_cast %92 : vector<128x8xf32> to vector<1x8x16x8xf32>
    %c0_39 = arith.constant 0 : index
    %c0_40 = arith.constant 0 : index
    %c0_41 = arith.constant 0 : index
    %c0_42 = arith.constant 0 : index
    %94 = vector.load %arg7[%c0_39, %c0_40, %c0_41, %c0_42] : memref<1x8x16x8xf32, #tpu.memory_space<vmem>>, vector<1x8x16x8xf32>
    tpu.vector_store %arg7[%c0_39, %c0_40, %c0_41, %c0_42], %93 {strides = array<i32>} : memref<1x8x16x8xf32, #tpu.memory_space<vmem>>, vector<1x8x16x8xf32>,
    return
  }
  func.func @transform_0(%arg0: i32, %arg1: i32) -> (i32, i32, i32, i32) {
    %c0_i32 = arith.constant 0 : i32
    %c0_i32_0 = arith.constant 0 : i32
    %c0_i32_1 = arith.constant 0 : i32
    %c0_i32_2 = arith.constant 0 : i32
    return %arg0, %c0_i32, %c0_i32_0, %c0_i32_1 : i32, i32, i32, i32
  }
  func.func @transform_1(%arg0: i32, %arg1: i32) -> (i32, i32) {
    %c0_i32 = arith.constant 0 : i32
    %c0_i32_0 = arith.constant 0 : i32
    %c0_i32_1 = arith.constant 0 : i32
    return %c0_i32, %c0_i32_0 : i32, i32
  }
  func.func @transform_2(%arg0: i32, %arg1: i32) -> (i32, i32) {
    %c0_i32 = arith.constant 0 : i32
    %c0_i32_0 = arith.constant 0 : i32
    %c0_i32_1 = arith.constant 0 : i32
    return %c0_i32, %c0_i32_0 : i32, i32
  }
  func.func @transform_3(%arg0: i32, %arg1: i32) -> (i32, i32) {
    %c0_i32 = arith.constant 0 : i32
    %c0_i32_0 = arith.constant 0 : i32
    %c0_i32_1 = arith.constant 0 : i32
    return %c0_i32, %c0_i32_0 : i32, i32
  }
  func.func @transform_4(%arg0: i32, %arg1: i32) -> (i32, i32) {
    %c0_i32 = arith.constant 0 : i32
    %c0_i32_0 = arith.constant 0 : i32
    %c0_i32_1 = arith.constant 0 : i32
    return %c0_i32, %c0_i32_0 : i32, i32
  }
  func.func @transform_5(%arg0: i32, %arg1: i32) -> (i32, i32, i32, i32) {
    %c0_i32 = arith.constant 0 : i32
    %c0_i32_0 = arith.constant 0 : i32
    %c0_i32_1 = arith.constant 0 : i32
    return %arg0, %arg1, %c0_i32, %c0_i32_0 : i32, i32, i32, i32
  }
}

</mosaic_0001>

<llo_original>
// kernel: depthwise_conv_forward.1
$region0: #{depthwise_conv_forward.1}
  #allocation0 [shape = 'u32[]', space=smem, size = 0x4, offset = 0x4, fixed_abs, tag = 'smem constant byte address 0x4 - core index']
  #allocation1 [shape = 'u32[144,128]{1,0:T(1,128)}', space=vmem, size = 0x12000, scoped, tag = 'internal scratch']
  %s0 = inlined_call_operand.vmem [shape: f32[2,18,18,4], index: 0, kind: input, shape index: {}]
  %s1 = inlined_call_operand.vmem [shape: f32[9,4], index: 1, kind: input, shape index: {}]
  %s2 = inlined_call_operand.vmem [shape: f32[4,8], index: 2, kind: input, shape index: {}]
  %s3 = inlined_call_operand.vmem [shape: f32[4,8], index: 3, kind: input, shape index: {}]
  %s4 = inlined_call_operand.vmem [shape: f32[1,8], index: 4, kind: input, shape index: {}]
  %s5 = inlined_call_operand.vmem [shape: f32[2,16,16,8], index: 5, kind: output, shape index: {}]
  %s6 = sld [smem:[#allocation0]]
  $region53: #{depthwise_conv_forward.1} parent=0
    _
  %s8 = ssub.s32 1, %s6
  %s9 = scalar_select 0, %s8, %s6
  loop: start=0, step=1, limit=6
  $region2: #{depthwise_conv_forward.1} parent=0 // loop_pre_header
    _
  $region3: #{depthwise_conv_forward.1} parent=0 // loop_header
    %s11 = sphi 0, %s15
    %p12 = scmp.ge.s32.totalorder %s11, 6
    %s18 = sphi 0, %s30
    %s19 = sphi 0, %s26
    %s20 = sphi 0, %s18
    %s21 = sphi 0, %s19
    %s22 = sphi 0, %s20
    %s23 = sphi 0, %s21
    %s33 = sphi 0, %s35
    %s36 = sphi 0, %s33
    %s37 = sphi 0, %s36
    %s53 = sphi 0, %s37
    %s57 = sphi 0, %s57
    %s59 = sphi 0, %s57
    %s60 = sphi 0, %s59
    %s74 = sphi 0, %s60
    %s78 = sphi 0, %s78
    %s80 = sphi 0, %s78
    %s81 = sphi 0, %s80
    %s95 = sphi 0, %s81
    %s99 = sphi 0, %s99
    %s101 = sphi 0, %s99
    %s102 = sphi 0, %s101
    %s116 = sphi 0, %s102
    %s120 = sphi 0, %s120
    %s122 = sphi 0, %s120
    %s123 = sphi 0, %s122
    %s137 = sphi 0, %s123
    %s145 = sphi 0, %s147
    %s148 = sphi 0, %s145
    %s149 = sphi 0, %s148
    %s165 = sphi 0, %s149
  $region4: #{depthwise_conv_forward.1} parent=0 // loop_header_branch
    %14 = sbr.rel (%p12) target = $region8
  $region5: #{depthwise_conv_forward.1} parent=0 // loop_body
    %s16 = ssub.s32 %s11, 1
    %s17 = ssub.s32 %s11, 2
    %s24 = sadd.s32 1, %s19
    %p25 = scmp.ge.s32.totalorder %s24, 2
    %s26 = scalar_select %p25, 0, %s24
    %s27 = sadd.s32 1, %s18
    %s28 = scalar_select %p25, %s27, %s18
    %p29 = scmp.ge.s32.totalorder %s28, 2
    %s30 = scalar_select %p29, 0, %s28
    %s31 = ssub.s32 %s18, %s30
    %p32 = scmp.eq.s32.totalorder %s31, 0
    %s34 = sadd.s32 %s33, 1
    %s35 = scalar_select %p32, %s33, %s34
    %p38 = pneg %p32
    %p39 = scmp.eq.s32.totalorder %s11, 3
    %p40 = por %p38, %p39
    %p41 = scmp.ne.s32.totalorder %s33, %s36
    %p42 = scmp.eq.s32.totalorder %s11, 0
    %p43 = por %p41, %p42
    %p44 = scmp.ne.s32.totalorder %s33, %s36
    %p45 = scmp.eq.s32.totalorder %s16, 3
    %p46 = por %p44, %p45
    %p47 = scmp.ne.s32.totalorder %s36, %s37
    %p48 = scmp.eq.s32.totalorder %s16, 0
    %p49 = por %p47, %p48
    %p50 = scmp.ne.s32.totalorder %s36, %s37
    %p51 = scmp.eq.s32.totalorder %s17, 3
    %p52 = por %p50, %p51
    %p54 = scmp.ne.s32.totalorder %s37, %s53
    %p55 = scmp.eq.s32.totalorder %s17, 0
    %p56 = por %p54, %p55
    %s58 = sadd.s32 %s57, 1
    %p61 = scmp.eq.s32.totalorder %s11, 3
    %p62 = scmp.ne.s32.totalorder %s57, %s59
    %p63 = scmp.eq.s32.totalorder %s11, 0
    %p64 = por %p62, %p63
    %p65 = scmp.ne.s32.totalorder %s57, %s59
    %p66 = scmp.eq.s32.totalorder %s16, 3
    %p67 = por %p65, %p66
    %p68 = scmp.ne.s32.totalorder %s59, %s60
    %p69 = scmp.eq.s32.totalorder %s16, 0
    %p70 = por %p68, %p69
    %p71 = scmp.ne.s32.totalorder %s59, %s60
    %p72 = scmp.eq.s32.totalorder %s17, 3
    %p73 = por %p71, %p72
    %p75 = scmp.ne.s32.totalorder %s60, %s74
    %p76 = scmp.eq.s32.totalorder %s17, 0
    %p77 = por %p75, %p76
    %s79 = sadd.s32 %s78, 1
    %p82 = scmp.eq.s32.totalorder %s11, 3
    %p83 = scmp.ne.s32.totalorder %s78, %s80
    %p84 = scmp.eq.s32.totalorder %s11, 0
    %p85 = por %p83, %p84
    %p86 = scmp.ne.s32.totalorder %s78, %s80
    %p87 = scmp.eq.s32.totalorder %s16, 3
    %p88 = por %p86, %p87
    %p89 = scmp.ne.s32.totalorder %s80, %s81
    %p90 = scmp.eq.s32.totalorder %s16, 0
    %p91 = por %p89, %p90
    %p92 = scmp.ne.s32.totalorder %s80, %s81
    %p93 = scmp.eq.s32.totalorder %s17, 3
    %p94 = por %p92, %p93
    %p96 = scmp.ne.s32.totalorder %s81, %s95
    %p97 = scmp.eq.s32.totalorder %s17, 0
    %p98 = por %p96, %p97
    %s100 = sadd.s32 %s99, 1
    %p103 = scmp.eq.s32.totalorder %s11, 3
    %p104 = scmp.ne.s32.totalorder %s99, %s101
    %p105 = scmp.eq.s32.totalorder %s11, 0
    %p106 = por %p104, %p105
    %p107 = scmp.ne.s32.totalorder %s99, %s101
    %p108 = scmp.eq.s32.totalorder %s16, 3
    %p109 = por %p107, %p108
    %p110 = scmp.ne.s32.totalorder %s101, %s102
    %p111 = scmp.eq.s32.totalorder %s16, 0
    %p112 = por %p110, %p111
    %p113 = scmp.ne.s32.totalorder %s101, %s102
    %p114 = scmp.eq.s32.totalorder %s17, 3
    %p115 = por %p113, %p114
    %p117 = scmp.ne.s32.totalorder %s102, %s116
    %p118 = scmp.eq.s32.totalorder %s17, 0
    %p119 = por %p117, %p118
    %s121 = sadd.s32 %s120, 1
    %p124 = scmp.eq.s32.totalorder %s11, 3
    %p125 = scmp.ne.s32.totalorder %s120, %s122
    %p126 = scmp.eq.s32.totalorder %s11, 0
    %p127 = por %p125, %p126
    %p128 = scmp.ne.s32.totalorder %s120, %s122
    %p129 = scmp.eq.s32.totalorder %s16, 3
    %p130 = por %p128, %p129
    %p131 = scmp.ne.s32.totalorder %s122, %s123
    %p132 = scmp.eq.s32.totalorder %s16, 0
    %p133 = por %p131, %p132
    %p134 = scmp.ne.s32.totalorder %s122, %s123
    %p135 = scmp.eq.s32.totalorder %s17, 3
    %p136 = por %p134, %p135
    %p138 = scmp.ne.s32.totalorder %s123, %s137
    %p139 = scmp.eq.s32.totalorder %s17, 0
    %p140 = por %p138, %p139
    %s141 = ssub.s32 %s18, %s30
    %s142 = ssub.s32 %s19, %s26
    %s143 = sor.u32 %s141, %s142
    %p144 = scmp.eq.s32.totalorder %s143, 0
    %s146 = sadd.s32 %s145, 1
    %s147 = scalar_select %p144, %s145, %s146
    %p150 = pneg %p144
    %p151 = scmp.eq.s32.totalorder %s11, 3
    %p152 = por %p150, %p151
    %p153 = scmp.ne.s32.totalorder %s145, %s148
    %p154 = scmp.eq.s32.totalorder %s11, 0
    %p155 = por %p153, %p154
    %p156 = scmp.ne.s32.totalorder %s145, %s148
    %p157 = scmp.eq.s32.totalorder %s16, 3
    %p158 = por %p156, %p157
    %p159 = scmp.ne.s32.totalorder %s148, %s149
    %p160 = scmp.eq.s32.totalorder %s16, 0
    %p161 = por %p159, %p160
    %p162 = scmp.ne.s32.totalorder %s148, %s149
    %p163 = scmp.eq.s32.totalorder %s17, 3
    %p164 = por %p162, %p163
    %p166 = scmp.ne.s32.totalorder %s149, %s165
    %p167 = scmp.eq.s32.totalorder %s17, 0
    %p168 = por %p166, %p167
    %p169 = scmp.le.s32.totalorder 1, %s11
    %p170 = scmp.lt.s32.totalorder %s11, 5
    %p171 = pnand %p169, %p170
    %p172 = pneg %p171
    // Predicated region
    $region9: #{depthwise_conv_forward.1} parent=5 // pred_check
      _
    $region10: #{depthwise_conv_forward.1} parent=5 // pred_check_branch
      %174 = sbr.rel (%p171) target = $region12
    $region11: #{depthwise_conv_forward.1} parent=5 // pred_region
      %s175 = ssub.s32 %s11, 1
      // Predicated region
      $region13: #{depthwise_conv_forward.1} parent=11 // pred_check
        %p176 = pneg %p70
      $region14: #{depthwise_conv_forward.1} parent=11 // pred_check_branch
        %178 = sbr.rel (%p176) target = $region16
      $region15: #{depthwise_conv_forward.1} parent=11 // pred_region
        _
      $region16: #{depthwise_conv_forward.1} parent=11 // pred_fallthru
        _
      // Predicated region
      $region17: #{depthwise_conv_forward.1} parent=11 // pred_check
        %p179 = pneg %p91
      $region18: #{depthwise_conv_forward.1} parent=11 // pred_check_branch
        %181 = sbr.rel (%p179) target = $region20
      $region19: #{depthwise_conv_forward.1} parent=11 // pred_region
        _
      $region20: #{depthwise_conv_forward.1} parent=11 // pred_fallthru
        _
      // Predicated region
      $region21: #{depthwise_conv_forward.1} parent=11 // pred_check
        %p182 = pneg %p112
      $region22: #{depthwise_conv_forward.1} parent=11 // pred_check_branch
        %184 = sbr.rel (%p182) target = $region24
      $region23: #{depthwise_conv_forward.1} parent=11 // pred_region
        _
      $region24: #{depthwise_conv_forward.1} parent=11 // pred_fallthru
        _
      // Predicated region
      $region25: #{depthwise_conv_forward.1} parent=11 // pred_check
        %p185 = pneg %p133
      $region26: #{depthwise_conv_forward.1} parent=11 // pred_check_branch
        %187 = sbr.rel (%p185) target = $region28
      $region27: #{depthwise_conv_forward.1} parent=11 // pred_region
        _
      $region28: #{depthwise_conv_forward.1} parent=11 // pred_fallthru
        _
    $region12: #{depthwise_conv_forward.1} parent=5 // pred_fallthru
      _
    %p188 = scmp.lt.s32.totalorder %s11, 4
    // Predicated region
    $region29: #{depthwise_conv_forward.1} parent=5 // pred_check
      %p189 = pneg %p188
    $region30: #{depthwise_conv_forward.1} parent=5 // pred_check_branch
      %191 = sbr.rel (%p189) target = $region32
    $region31: #{depthwise_conv_forward.1} parent=5 // pred_region
      // Predicated region
      $region33: #{depthwise_conv_forward.1} parent=31 // pred_check
        %p192 = pneg %p43
      $region34: #{depthwise_conv_forward.1} parent=31 // pred_check_branch
        %194 = sbr.rel (%p192) target = $region36
      $region35: #{depthwise_conv_forward.1} parent=31 // pred_region
        %p195 = scmp.lt.s32.totalorder %s18, 1
        %s196 = scalar_select %p195, %s18, 1
        %s197 = smul.addr %s196, 54
        %s198 = smul.addr %s197, 8
        %s199 = scalar_lea.vmem %s0, %s198
      $region36: #{depthwise_conv_forward.1} parent=31 // pred_fallthru
        _
    $region32: #{depthwise_conv_forward.1} parent=5 // pred_fallthru
      _
    %p200 = scmp.le.s32.totalorder 1, %s11
    %p201 = scmp.lt.s32.totalorder %s11, 5
    %p202 = pnand %p200, %p201
    %p203 = pneg %p202
    // Predicated region
    $region37: #{depthwise_conv_forward.1} parent=5 // pred_check
      _
    $region38: #{depthwise_conv_forward.1} parent=5 // pred_check_branch
      %205 = sbr.rel (%p202) target = $region40
    $region39: #{depthwise_conv_forward.1} parent=5 // pred_region
      %s206 = ssub.s32 %s11, 1
      %p207 = scmp.lt.s32.totalorder %s20, 1
      %s208 = scalar_select %p207, %s20, 1
      %s209 = smul.addr %s208, 54
      %s210 = smul.addr %s209, 8
      %s211 = scalar_lea.vmem %s0, %s210
      %p212 = pneg %p49
      %p213 = pneg %p46
      %p214 = pneg %p70
      %p215 = pneg %p67
      %p216 = pneg %p91
      %p217 = pneg %p88
      %p218 = pneg %p112
      %p219 = pneg %p109
      %p220 = pneg %p133
      %p221 = pneg %p130
      %p222 = pneg %p161
      %p223 = pneg %p158
      %s224 = smul.u32 8, %s21
      %p225 = scmp.lt.s32.totalorder %s20, 1
      %s226 = scalar_select %p225, %s20, 1
      %p227 = scmp.lt.s32.totalorder %s224, 15
      %s228 = scalar_select %p227, %s224, 15
      %s229 = smul.addr %s228, 2
      %s230 = smul.addr %s226, 32
      %s231 = sadd.s32 %s229, %s230
      %s232 = smul.addr %s231, 8
      %s233 = scalar_lea.vmem %s5, %s232
      %p234 = scmp.lt.s32.totalorder %s20, 1
      %s235 = scalar_select %p234, %s20, 1
      %s236 = smul.addr %s235, 54
      %s237 = smul.addr %s236, 8
      %s238 = scalar_lea.vmem %s0, %s237
      %s239 = smul.u32 8, %s21
      %p240 = scmp.lt.s32.totalorder %s20, 1
      %s241 = scalar_select %p240, %s20, 1
      %p242 = scmp.lt.s32.totalorder %s239, 15
      %s243 = scalar_select %p242, %s239, 15
      %s244 = smul.addr %s243, 2
      %s245 = smul.addr %s241, 32
      %s246 = sadd.s32 %s244, %s245
      %s247 = smul.addr %s246, 8
      %s248 = scalar_lea.vmem %s5, %s247
      %s249 = smul.u32 8, %s21
      %s250 = smul.u32 %s21, 8
      %v251 = vld [vmem:[%s1] sm:$0xff]
      %v252 = vld [vmem:[%s1 + $0x8] sm:$0x1]
      %s253 = smul.u32 %s250, 24
      %s254 = scalar_lea.vmem %s238, %s253
      %v255 = vld [vmem:[%s254] sm:$0xff]
      %v256 = vld [vmem:[%s254 + $0x8] sm:$0xff]
      %v257 = vld [vmem:[%s254 + $0x18] sm:$0xff]
      %v258 = vld [vmem:[%s254 + $0x20] sm:$0xff]
      %v259 = vld [vmem:[%s254 + $0x30] sm:$0xff]
      %v260 = vld [vmem:[%s254 + $0x38] sm:$0xff]
      %v261 = vld [vmem:[%s254 + $0x48] sm:$0xff]
      %v262 = vld [vmem:[%s254 + $0x50] sm:$0xff]
      %v263 = vld [vmem:[%s254 + $0x60] sm:$0xff]
      %v264 = vld [vmem:[%s254 + $0x68] sm:$0xff]
      %v265 = vld [vmem:[%s254 + $0x78] sm:$0xff]
      %v266 = vld [vmem:[%s254 + $0x80] sm:$0xff]
      %v267 = vld [vmem:[%s254 + $0x90] sm:$0xff]
      %v268 = vld [vmem:[%s254 + $0x98] sm:$0xff]
      %v269 = vld [vmem:[%s254 + $0xa8] sm:$0xff]
      %v270 = vld [vmem:[%s254 + $0xb0] sm:$0xff]
      %v271 = vlaneseq
      %v272 = vshrl.u32 %v271, 7
      %v273 = vsub.s32 0, %v272
      %v274 = vrot.slane %v251, %v273
      %v275 = vmul.f32 %v255, %v274
      %v276 = vmul.f32 %v256, %v274
      %v277 = vmul.f32 %v257, %v274
      %v278 = vmul.f32 %v258, %v274
      %v279 = vmul.f32 %v259, %v274
      %v280 = vmul.f32 %v260, %v274
      %v281 = vmul.f32 %v261, %v274
      %v282 = vmul.f32 %v262, %v274
      %v283 = vmul.f32 %v263, %v274
      %v284 = vmul.f32 %v264, %v274
      %v285 = vmul.f32 %v265, %v274
      %v286 = vmul.f32 %v266, %v274
      %v287 = vmul.f32 %v267, %v274
      %v288 = vmul.f32 %v268, %v274
      %v289 = vmul.f32 %v269, %v274
      %v290 = vmul.f32 %v270, %v274
      %v291 = vld [vmem:[%s254 + $0x1] sm:$0xff]
      %v292 = vld [vmem:[%s254 + $0x9] sm:$0xff]
      %v293 = vld [vmem:[%s254 + $0x19] sm:$0xff]
      %v294 = vld [vmem:[%s254 + $0x21] sm:$0xff]
      %v295 = vld [vmem:[%s254 + $0x31] sm:$0xff]
      %v296 = vld [vmem:[%s254 + $0x39] sm:$0xff]
      %v297 = vld [vmem:[%s254 + $0x49] sm:$0xff]
      %v298 = vld [vmem:[%s254 + $0x51] sm:$0xff]
      %v299 = vld [vmem:[%s254 + $0x61] sm:$0xff]
      %v300 = vld [vmem:[%s254 + $0x69] sm:$0xff]
      %v301 = vld [vmem:[%s254 + $0x79] sm:$0xff]
      %v302 = vld [vmem:[%s254 + $0x81] sm:$0xff]
      %v303 = vld [vmem:[%s254 + $0x91] sm:$0xff]
      %v304 = vld [vmem:[%s254 + $0x99] sm:$0xff]
      %v305 = vld [vmem:[%s254 + $0xa9] sm:$0xff]
      %v306 = vld [vmem:[%s254 + $0xb1] sm:$0xff]
      %v307 = vlaneseq
      %v308 = vshrl.u32 %v307, 7
      %v309 = vsub.s32 1, %v308
      %v310 = vrot.slane %v251, %v309
      %v311 = vmul.f32 %v291, %v310
      %v312 = vmul.f32 %v292, %v310
      %v313 = vmul.f32 %v293, %v310
      %v314 = vmul.f32 %v294, %v310
      %v315 = vmul.f32 %v295, %v310
      %v316 = vmul.f32 %v296, %v310
      %v317 = vmul.f32 %v297, %v310
      %v318 = vmul.f32 %v298, %v310
      %v319 = vmul.f32 %v299, %v310
      %v320 = vmul.f32 %v300, %v310
      %v321 = vmul.f32 %v301, %v310
      %v322 = vmul.f32 %v302, %v310
      %v323 = vmul.f32 %v303, %v310
      %v324 = vmul.f32 %v304, %v310
      %v325 = vmul.f32 %v305, %v310
      %v326 = vmul.f32 %v306, %v310
      %v327 = vadd.f32 %v275, %v311
      %v328 = vadd.f32 %v276, %v312
      %v329 = vadd.f32 %v277, %v313
      %v330 = vadd.f32 %v278, %v314
      %v331 = vadd.f32 %v279, %v315
      %v332 = vadd.f32 %v280, %v316
      %v333 = vadd.f32 %v281, %v317
      %v334 = vadd.f32 %v282, %v318
      %v335 = vadd.f32 %v283, %v319
      %v336 = vadd.f32 %v284, %v320
      %v337 = vadd.f32 %v285, %v321
      %v338 = vadd.f32 %v286, %v322
      %v339 = vadd.f32 %v287, %v323
      %v340 = vadd.f32 %v288, %v324
      %v341 = vadd.f32 %v289, %v325
      %v342 = vadd.f32 %v290, %v326
      %v343 = vld [vmem:[%s254 + $0x2] sm:$0xff]
      %v344 = vld [vmem:[%s254 + $0xa] sm:$0xff]
      %v345 = vld [vmem:[%s254 + $0x1a] sm:$0xff]
      %v346 = vld [vmem:[%s254 + $0x22] sm:$0xff]
      %v347 = vld [vmem:[%s254 + $0x32] sm:$0xff]
      %v348 = vld [vmem:[%s254 + $0x3a] sm:$0xff]
      %v349 = vld [vmem:[%s254 + $0x4a] sm:$0xff]
      %v350 = vld [vmem:[%s254 + $0x52] sm:$0xff]
      %v351 = vld [vmem:[%s254 + $0x62] sm:$0xff]
      %v352 = vld [vmem:[%s254 + $0x6a] sm:$0xff]
      %v353 = vld [vmem:[%s254 + $0x7a] sm:$0xff]
      %v354 = vld [vmem:[%s254 + $0x82] sm:$0xff]
      %v355 = vld [vmem:[%s254 + $0x92] sm:$0xff]
      %v356 = vld [vmem:[%s254 + $0x9a] sm:$0xff]
      %v357 = vld [vmem:[%s254 + $0xaa] sm:$0xff]
      %v358 = vld [vmem:[%s254 + $0xb2] sm:$0xff]
      %v359 = vlaneseq
      %v360 = vshrl.u32 %v359, 7
      %v361 = vsub.s32 2, %v360
      %v362 = vrot.slane %v251, %v361
      %v363 = vmul.f32 %v343, %v362
      %v364 = vmul.f32 %v344, %v362
      %v365 = vmul.f32 %v345, %v362
      %v366 = vmul.f32 %v346, %v362
      %v367 = vmul.f32 %v347, %v362
      %v368 = vmul.f32 %v348, %v362
      %v369 = vmul.f32 %v349, %v362
      %v370 = vmul.f32 %v350, %v362
      %v371 = vmul.f32 %v351, %v362
      %v372 = vmul.f32 %v352, %v362
      %v373 = vmul.f32 %v353, %v362
      %v374 = vmul.f32 %v354, %v362
      %v375 = vmul.f32 %v355, %v362
      %v376 = vmul.f32 %v356, %v362
      %v377 = vmul.f32 %v357, %v362
      %v378 = vmul.f32 %v358, %v362
      %v379 = vadd.f32 %v327, %v363
      %v380 = vadd.f32 %v328, %v364
      %v381 = vadd.f32 %v329, %v365
      %v382 = vadd.f32 %v330, %v366
      %v383 = vadd.f32 %v331, %v367
      %v384 = vadd.f32 %v332, %v368
      %v385 = vadd.f32 %v333, %v369
      %v386 = vadd.f32 %v334, %v370
      %v387 = vadd.f32 %v335, %v371
      %v388 = vadd.f32 %v336, %v372
      %v389 = vadd.f32 %v337, %v373
      %v390 = vadd.f32 %v338, %v374
      %v391 = vadd.f32 %v339, %v375
      %v392 = vadd.f32 %v340, %v376
      %v393 = vadd.f32 %v341, %v377
      %v394 = vadd.f32 %v342, %v378
      %s395 = sadd.s32 %s250, 1
      %s396 = smul.u32 %s395, 24
      %s397 = scalar_lea.vmem %s238, %s396
      %v398 = vld [vmem:[%s397] sm:$0xff]
      %v399 = vld [vmem:[%s397 + $0x8] sm:$0xff]
      %v400 = vld [vmem:[%s397 + $0x18] sm:$0xff]
      %v401 = vld [vmem:[%s397 + $0x20] sm:$0xff]
      %v402 = vld [vmem:[%s397 + $0x30] sm:$0xff]
      %v403 = vld [vmem:[%s397 + $0x38] sm:$0xff]
      %v404 = vld [vmem:[%s397 + $0x48] sm:$0xff]
      %v405 = vld [vmem:[%s397 + $0x50] sm:$0xff]
      %v406 = vld [vmem:[%s397 + $0x60] sm:$0xff]
      %v407 = vld [vmem:[%s397 + $0x68] sm:$0xff]
      %v408 = vld [vmem:[%s397 + $0x78] sm:$0xff]
      %v409 = vld [vmem:[%s397 + $0x80] sm:$0xff]
      %v410 = vld [vmem:[%s397 + $0x90] sm:$0xff]
      %v411 = vld [vmem:[%s397 + $0x98] sm:$0xff]
      %v412 = vld [vmem:[%s397 + $0xa8] sm:$0xff]
      %v413 = vld [vmem:[%s397 + $0xb0] sm:$0xff]
      %v414 = vlaneseq
      %v415 = vshrl.u32 %v414, 7
      %v416 = vsub.s32 3, %v415
      %v417 = vrot.slane %v251, %v416
      %v418 = vmul.f32 %v398, %v417
      %v419 = vmul.f32 %v399, %v417
      %v420 = vmul.f32 %v400, %v417
      %v421 = vmul.f32 %v401, %v417
      %v422 = vmul.f32 %v402, %v417
      %v423 = vmul.f32 %v403, %v417
      %v424 = vmul.f32 %v404, %v417
      %v425 = vmul.f32 %v405, %v417
      %v426 = vmul.f32 %v406, %v417
      %v427 = vmul.f32 %v407, %v417
      %v428 = vmul.f32 %v408, %v417
      %v429 = vmul.f32 %v409, %v417
      %v430 = vmul.f32 %v410, %v417
      %v431 = vmul.f32 %v411, %v417
      %v432 = vmul.f32 %v412, %v417
      %v433 = vmul.f32 %v413, %v417
      %v434 = vadd.f32 %v379, %v418
      %v435 = vadd.f32 %v380, %v419
      %v436 = vadd.f32 %v381, %v420
      %v437 = vadd.f32 %v382, %v421
      %v438 = vadd.f32 %v383, %v422
      %v439 = vadd.f32 %v384, %v423
      %v440 = vadd.f32 %v385, %v424
      %v441 = vadd.f32 %v386, %v425
      %v442 = vadd.f32 %v387, %v426
      %v443 = vadd.f32 %v388, %v427
      %v444 = vadd.f32 %v389, %v428
      %v445 = vadd.f32 %v390, %v429
      %v446 = vadd.f32 %v391, %v430
      %v447 = vadd.f32 %v392, %v431
      %v448 = vadd.f32 %v393, %v432
      %v449 = vadd.f32 %v394, %v433
      %v450 = vld [vmem:[%s397 + $0x1] sm:$0xff]
      %v451 = vld [vmem:[%s397 + $0x9] sm:$0xff]
      %v452 = vld [vmem:[%s397 + $0x19] sm:$0xff]
      %v453 = vld [vmem:[%s397 + $0x21] sm:$0xff]
      %v454 = vld [vmem:[%s397 + $0x31] sm:$0xff]
      %v455 = vld [vmem:[%s397 + $0x39] sm:$0xff]
      %v456 = vld [vmem:[%s397 + $0x49] sm:$0xff]
      %v457 = vld [vmem:[%s397 + $0x51] sm:$0xff]
      %v458 = vld [vmem:[%s397 + $0x61] sm:$0xff]
      %v459 = vld [vmem:[%s397 + $0x69] sm:$0xff]
      %v460 = vld [vmem:[%s397 + $0x79] sm:$0xff]
      %v461 = vld [vmem:[%s397 + $0x81] sm:$0xff]
      %v462 = vld [vmem:[%s397 + $0x91] sm:$0xff]
      %v463 = vld [vmem:[%s397 + $0x99] sm:$0xff]
      %v464 = vld [vmem:[%s397 + $0xa9] sm:$0xff]
      %v465 = vld [vmem:[%s397 + $0xb1] sm:$0xff]
      %v466 = vlaneseq
      %v467 = vshrl.u32 %v466, 7
      %v468 = vsub.s32 4, %v467
      %v469 = vrot.slane %v251, %v468
      %v470 = vmul.f32 %v450, %v469
      %v471 = vmul.f32 %v451, %v469
      %v472 = vmul.f32 %v452, %v469
      %v473 = vmul.f32 %v453, %v469
      %v474 = vmul.f32 %v454, %v469
      %v475 = vmul.f32 %v455, %v469
      %v476 = vmul.f32 %v456, %v469
      %v477 = vmul.f32 %v457, %v469
      %v478 = vmul.f32 %v458, %v469
      %v479 = vmul.f32 %v459, %v469
      %v480 = vmul.f32 %v460, %v469
      %v481 = vmul.f32 %v461, %v469
      %v482 = vmul.f32 %v462, %v469
      %v483 = vmul.f32 %v463, %v469
      %v484 = vmul.f32 %v464, %v469
      %v485 = vmul.f32 %v465, %v469
      %v486 = vadd.f32 %v434, %v470
      %v487 = vadd.f32 %v435, %v471
      %v488 = vadd.f32 %v436, %v472
      %v489 = vadd.f32 %v437, %v473
      %v490 = vadd.f32 %v438, %v474
      %v491 = vadd.f32 %v439, %v475
      %v492 = vadd.f32 %v440, %v476
      %v493 = vadd.f32 %v441, %v477
      %v494 = vadd.f32 %v442, %v478
      %v495 = vadd.f32 %v443, %v479
      %v496 = vadd.f32 %v444, %v480
      %v497 = vadd.f32 %v445, %v481
      %v498 = vadd.f32 %v446, %v482
      %v499 = vadd.f32 %v447, %v483
      %v500 = vadd.f32 %v448, %v484
      %v501 = vadd.f32 %v449, %v485
      %v502 = vld [vmem:[%s397 + $0x2] sm:$0xff]
      %v503 = vld [vmem:[%s397 + $0xa] sm:$0xff]
      %v504 = vld [vmem:[%s397 + $0x1a] sm:$0xff]
      %v505 = vld [vmem:[%s397 + $0x22] sm:$0xff]
      %v506 = vld [vmem:[%s397 + $0x32] sm:$0xff]
      %v507 = vld [vmem:[%s397 + $0x3a] sm:$0xff]
      %v508 = vld [vmem:[%s397 + $0x4a] sm:$0xff]
      %v509 = vld [vmem:[%s397 + $0x52] sm:$0xff]
      %v510 = vld [vmem:[%s397 + $0x62] sm:$0xff]
      %v511 = vld [vmem:[%s397 + $0x6a] sm:$0xff]
      %v512 = vld [vmem:[%s397 + $0x7a] sm:$0xff]
      %v513 = vld [vmem:[%s397 + $0x82] sm:$0xff]
      %v514 = vld [vmem:[%s397 + $0x92] sm:$0xff]
      %v515 = vld [vmem:[%s397 + $0x9a] sm:$0xff]
      %v516 = vld [vmem:[%s397 + $0xaa] sm:$0xff]
      %v517 = vld [vmem:[%s397 + $0xb2] sm:$0xff]
      %v518 = vlaneseq
      %v519 = vshrl.u32 %v518, 7
      %v520 = vsub.s32 5, %v519
      %v521 = vrot.slane %v251, %v520
      %v522 = vmul.f32 %v502, %v521
      %v523 = vmul.f32 %v503, %v521
      %v524 = vmul.f32 %v504, %v521
      %v525 = vmul.f32 %v505, %v521
      %v526 = vmul.f32 %v506, %v521
      %v527 = vmul.f32 %v507, %v521
      %v528 = vmul.f32 %v508, %v521
      %v529 = vmul.f32 %v509, %v521
      %v530 = vmul.f32 %v510, %v521
      %v531 = vmul.f32 %v511, %v521
      %v532 = vmul.f32 %v512, %v521
      %v533 = vmul.f32 %v513, %v521
      %v534 = vmul.f32 %v514, %v521
      %v535 = vmul.f32 %v515, %v521
      %v536 = vmul.f32 %v516, %v521
      %v537 = vmul.f32 %v517, %v521
      %v538 = vadd.f32 %v486, %v522
      %v539 = vadd.f32 %v487, %v523
      %v540 = vadd.f32 %v488, %v524
      %v541 = vadd.f32 %v489, %v525
      %v542 = vadd.f32 %v490, %v526
      %v543 = vadd.f32 %v491, %v527
      %v544 = vadd.f32 %v492, %v528
      %v545 = vadd.f32 %v493, %v529
      %v546 = vadd.f32 %v494, %v530
      %v547 = vadd.f32 %v495, %v531
      %v548 = vadd.f32 %v496, %v532
      %v549 = vadd.f32 %v497, %v533
      %v550 = vadd.f32 %v498, %v534
      %v551 = vadd.f32 %v499, %v535
      %v552 = vadd.f32 %v500, %v536
      %v553 = vadd.f32 %v501, %v537
      %s554 = sadd.s32 %s250, 2
      %s555 = smul.u32 %s554, 24
      %s556 = scalar_lea.vmem %s238, %s555
      %v557 = vld [vmem:[%s556] sm:$0xff]
      %v558 = vld [vmem:[%s556 + $0x8] sm:$0xff]
      %v559 = vld [vmem:[%s556 + $0x18] sm:$0xff]
      %v560 = vld [vmem:[%s556 + $0x20] sm:$0xff]
      %v561 = vld [vmem:[%s556 + $0x30] sm:$0xff]
      %v562 = vld [vmem:[%s556 + $0x38] sm:$0xff]
      %v563 = vld [vmem:[%s556 + $0x48] sm:$0xff]
      %v564 = vld [vmem:[%s556 + $0x50] sm:$0xff]
      %v565 = vld [vmem:[%s556 + $0x60] sm:$0xff]
      %v566 = vld [vmem:[%s556 + $0x68] sm:$0xff]
      %v567 = vld [vmem:[%s556 + $0x78] sm:$0xff]
      %v568 = vld [vmem:[%s556 + $0x80] sm:$0xff]
      %v569 = vld [vmem:[%s556 + $0x90] sm:$0xff]
      %v570 = vld [vmem:[%s556 + $0x98] sm:$0xff]
      %v571 = vld [vmem:[%s556 + $0xa8] sm:$0xff]
      %v572 = vld [vmem:[%s556 + $0xb0] sm:$0xff]
      %v573 = vlaneseq
      %v574 = vshrl.u32 %v573, 7
      %v575 = vsub.s32 6, %v574
      %v576 = vrot.slane %v251, %v575
      %v577 = vmul.f32 %v557, %v576
      %v578 = vmul.f32 %v558, %v576
      %v579 = vmul.f32 %v559, %v576
      %v580 = vmul.f32 %v560, %v576
      %v581 = vmul.f32 %v561, %v576
      %v582 = vmul.f32 %v562, %v576
      %v583 = vmul.f32 %v563, %v576
      %v584 = vmul.f32 %v564, %v576
      %v585 = vmul.f32 %v565, %v576
      %v586 = vmul.f32 %v566, %v576
      %v587 = vmul.f32 %v567, %v576
      %v588 = vmul.f32 %v568, %v576
      %v589 = vmul.f32 %v569, %v576
      %v590 = vmul.f32 %v570, %v576
      %v591 = vmul.f32 %v571, %v576
      %v592 = vmul.f32 %v572, %v576
      %v593 = vadd.f32 %v538, %v577
      %v594 = vadd.f32 %v539, %v578
      %v595 = vadd.f32 %v540, %v579
      %v596 = vadd.f32 %v541, %v580
      %v597 = vadd.f32 %v542, %v581
      %v598 = vadd.f32 %v543, %v582
      %v599 = vadd.f32 %v544, %v583
      %v600 = vadd.f32 %v545, %v584
      %v601 = vadd.f32 %v546, %v585
      %v602 = vadd.f32 %v547, %v586
      %v603 = vadd.f32 %v548, %v587
      %v604 = vadd.f32 %v549, %v588
      %v605 = vadd.f32 %v550, %v589
      %v606 = vadd.f32 %v551, %v590
      %v607 = vadd.f32 %v552, %v591
      %v608 = vadd.f32 %v553, %v592
      %v609 = vld [vmem:[%s556 + $0x1] sm:$0xff]
      %v610 = vld [vmem:[%s556 + $0x9] sm:$0xff]
      %v611 = vld [vmem:[%s556 + $0x19] sm:$0xff]
      %v612 = vld [vmem:[%s556 + $0x21] sm:$0xff]
      %v613 = vld [vmem:[%s556 + $0x31] sm:$0xff]
      %v614 = vld [vmem:[%s556 + $0x39] sm:$0xff]
      %v615 = vld [vmem:[%s556 + $0x49] sm:$0xff]
      %v616 = vld [vmem:[%s556 + $0x51] sm:$0xff]
      %v617 = vld [vmem:[%s556 + $0x61] sm:$0xff]
      %v618 = vld [vmem:[%s556 + $0x69] sm:$0xff]
      %v619 = vld [vmem:[%s556 + $0x79] sm:$0xff]
      %v620 = vld [vmem:[%s556 + $0x81] sm:$0xff]
      %v621 = vld [vmem:[%s556 + $0x91] sm:$0xff]
      %v622 = vld [vmem:[%s556 + $0x99] sm:$0xff]
      %v623 = vld [vmem:[%s556 + $0xa9] sm:$0xff]
      %v624 = vld [vmem:[%s556 + $0xb1] sm:$0xff]
      %v625 = vlaneseq
      %v626 = vshrl.u32 %v625, 7
      %v627 = vsub.s32 7, %v626
      %v628 = vrot.slane %v251, %v627
      %v629 = vmul.f32 %v609, %v628
      %v630 = vmul.f32 %v610, %v628
      %v631 = vmul.f32 %v611, %v628
      %v632 = vmul.f32 %v612, %v628
      %v633 = vmul.f32 %v613, %v628
      %v634 = vmul.f32 %v614, %v628
      %v635 = vmul.f32 %v615, %v628
      %v636 = vmul.f32 %v616, %v628
      %v637 = vmul.f32 %v617, %v628
      %v638 = vmul.f32 %v618, %v628
      %v639 = vmul.f32 %v619, %v628
      %v640 = vmul.f32 %v620, %v628
      %v641 = vmul.f32 %v621, %v628
      %v642 = vmul.f32 %v622, %v628
      %v643 = vmul.f32 %v623, %v628
      %v644 = vmul.f32 %v624, %v628
      %v645 = vadd.f32 %v593, %v629
      %v646 = vadd.f32 %v594, %v630
      %v647 = vadd.f32 %v595, %v631
      %v648 = vadd.f32 %v596, %v632
      %v649 = vadd.f32 %v597, %v633
      %v650 = vadd.f32 %v598, %v634
      %v651 = vadd.f32 %v599, %v635
      %v652 = vadd.f32 %v600, %v636
      %v653 = vadd.f32 %v601, %v637
      %v654 = vadd.f32 %v602, %v638
      %v655 = vadd.f32 %v603, %v639
      %v656 = vadd.f32 %v604, %v640
      %v657 = vadd.f32 %v605, %v641
      %v658 = vadd.f32 %v606, %v642
      %v659 = vadd.f32 %v607, %v643
      %v660 = vadd.f32 %v608, %v644
      %v661 = vld [vmem:[%s556 + $0x2] sm:$0xff]
      %v662 = vld [vmem:[%s556 + $0xa] sm:$0xff]
      %v663 = vld [vmem:[%s556 + $0x1a] sm:$0xff]
      %v664 = vld [vmem:[%s556 + $0x22] sm:$0xff]
      %v665 = vld [vmem:[%s556 + $0x32] sm:$0xff]
      %v666 = vld [vmem:[%s556 + $0x3a] sm:$0xff]
      %v667 = vld [vmem:[%s556 + $0x4a] sm:$0xff]
      %v668 = vld [vmem:[%s556 + $0x52] sm:$0xff]
      %v669 = vld [vmem:[%s556 + $0x62] sm:$0xff]
      %v670 = vld [vmem:[%s556 + $0x6a] sm:$0xff]
      %v671 = vld [vmem:[%s556 + $0x7a] sm:$0xff]
      %v672 = vld [vmem:[%s556 + $0x82] sm:$0xff]
      %v673 = vld [vmem:[%s556 + $0x92] sm:$0xff]
      %v674 = vld [vmem:[%s556 + $0x9a] sm:$0xff]
      %v675 = vld [vmem:[%s556 + $0xaa] sm:$0xff]
      %v676 = vld [vmem:[%s556 + $0xb2] sm:$0xff]
      %v677 = vlaneseq
      %v678 = vshrl.u32 %v677, 7
      %v679 = vsub.s32 0, %v678
      %v680 = vrot.slane %v252, %v679
      %v681 = vmul.f32 %v661, %v680
      %v682 = vmul.f32 %v662, %v680
      %v683 = vmul.f32 %v663, %v680
      %v684 = vmul.f32 %v664, %v680
      %v685 = vmul.f32 %v665, %v680
      %v686 = vmul.f32 %v666, %v680
      %v687 = vmul.f32 %v667, %v680
      %v688 = vmul.f32 %v668, %v680
      %v689 = vmul.f32 %v669, %v680
      %v690 = vmul.f32 %v670, %v680
      %v691 = vmul.f32 %v671, %v680
      %v692 = vmul.f32 %v672, %v680
      %v693 = vmul.f32 %v673, %v680
      %v694 = vmul.f32 %v674, %v680
      %v695 = vmul.f32 %v675, %v680
      %v696 = vmul.f32 %v676, %v680
      %v697 = vadd.f32 %v645, %v681
      %v698 = vadd.f32 %v646, %v682
      %v699 = vadd.f32 %v647, %v683
      %v700 = vadd.f32 %v648, %v684
      %v701 = vadd.f32 %v649, %v685
      %v702 = vadd.f32 %v650, %v686
      %v703 = vadd.f32 %v651, %v687
      %v704 = vadd.f32 %v652, %v688
      %v705 = vadd.f32 %v653, %v689
      %v706 = vadd.f32 %v654, %v690
      %v707 = vadd.f32 %v655, %v691
      %v708 = vadd.f32 %v656, %v692
      %v709 = vadd.f32 %v657, %v693
      %v710 = vadd.f32 %v658, %v694
      %v711 = vadd.f32 %v659, %v695
      %v712 = vadd.f32 %v660, %v696
      %v713 = vld [vmem:[%s2] sm:$0xf]
      %v714 = vld [vmem:[%s3] sm:$0xf]
      %vm715 = vcmask 31744
      %v717 = vsel %vm715, %v450, 0
      %v720 = vsel %vm715, %v451, 0
      %v723 = vsel %vm715, %v452, 0
      %v726 = vsel %vm715, %v453, 0
      %v729 = vsel %vm715, %v454, 0
      %v732 = vsel %vm715, %v455, 0
      %v735 = vsel %vm715, %v456, 0
      %v738 = vsel %vm715, %v457, 0
      %v741 = vsel %vm715, %v458, 0
      %v744 = vsel %vm715, %v459, 0
      %v747 = vsel %vm715, %v460, 0
      %v750 = vsel %vm715, %v461, 0
      %v753 = vsel %vm715, %v462, 0
      %v756 = vsel %vm715, %v463, 0
      %v759 = vsel %vm715, %v464, 0
      %v762 = vsel %vm715, %v465, 0
      %vm764 = vcmask 1043456
      %v766 = vsel %vm764, %v714, 0
      %768 = vmatprep.subr.mxu0 0.0
      %769 = vmatpush1.msra.mxu0 0.0
      %770 = vmatprep.subr.mxu0 0.0
      %771 = vmatpush1.msra.mxu0 0.0
      %772 = vmatprep.subr.mxu0 0.0
      %773 = vmatpush1.msra.mxu0 0.0
      %774 = vmatprep.subr.mxu0 0.0
      %775 = vmatpush1.msra.mxu0 0.0
      %776 = vmatprep.subr.mxu0 0.0
      %777 = vmatpush1.msra.mxu0 0.0
      %778 = vmatprep.subr.mxu0 0.0
      %779 = vmatpush1.msra.mxu0 0.0
      %780 = vmatprep.subr.mxu0 0.0
      %781 = vmatpush1.msra.mxu0 0.0
      %782 = vmatprep.subr.mxu0 0.0
      %783 = vmatpush1.msra.mxu0 0.0
      %784 = vmatprep.subr.mxu0 0.0
      %785 = vmatpush1.msra.mxu0 0.0
      %786 = vmatprep.subr.mxu0 0.0
      %787 = vmatpush1.msra.mxu0 0.0
      %788 = vmatprep.subr.mxu0 0.0
      %789 = vmatpush1.msra.mxu0 0.0
      %790 = vmatprep.subr.mxu0 0.0
      %791 = vmatpush1.msra.mxu0 0.0
      %792 = vmatprep.subr.mxu0 0.0
      %793 = vmatpush1.msra.mxu0 0.0
      %794 = vmatprep.subr.mxu0 0.0
      %795 = vmatpush1.msra.mxu0 0.0
      %796 = vmatprep.subr.mxu0 0.0
      %797 = vmatpush1.msra.mxu0 0.0
      %798 = vmatprep.subr.mxu0 0.0
      %799 = vmatpush1.msra.mxu0 %v766
      %800 = vmatprep.subr.mxu0 0.0
      %801 = vmatpush2.msra.mxu0 0.0
      %802 = vmatprep.subr.mxu0 0.0
      %803 = vmatpush2.msra.mxu0 0.0
      %804 = vmatprep.subr.mxu0 0.0
      %805 = vmatpush2.msra.mxu0 0.0
      %806 = vmatprep.subr.mxu0 0.0
      %807 = vmatpush2.msra.mxu0 0.0
      %808 = vmatprep.subr.mxu0 0.0
      %809 = vmatpush2.msra.mxu0 0.0
      %810 = vmatprep.subr.mxu0 0.0
      %811 = vmatpush2.msra.mxu0 0.0
      %812 = vmatprep.subr.mxu0 0.0
      %813 = vmatpush2.msra.mxu0 0.0
      %814 = vmatprep.subr.mxu0 0.0
      %815 = vmatpush2.msra.mxu0 0.0
      %816 = vmatprep.subr.mxu0 0.0
      %817 = vmatpush2.msra.mxu0 0.0
      %818 = vmatprep.subr.mxu0 0.0
      %819 = vmatpush2.msra.mxu0 0.0
      %820 = vmatprep.subr.mxu0 0.0
      %821 = vmatpush2.msra.mxu0 0.0
      %822 = vmatprep.subr.mxu0 0.0
      %823 = vmatpush2.msra.mxu0 0.0
      %824 = vmatprep.subr.mxu0 0.0
      %825 = vmatpush2.msra.mxu0 0.0
      %826 = vmatprep.subr.mxu0 0.0
      %827 = vmatpush2.msra.mxu0 0.0
      %828 = vmatprep.subr.mxu0 0.0
      %829 = vmatpush2.msra.mxu0 0.0
      %830 = vmatprep.subr.mxu0 0.0
      %831 = vmatpush2.msra.mxu0 0.0
      %832 = vmatprep.mubr.f32.mxu0 0.0
      %833 = vmatmul.mubr.f32.gmra.mxu0 %v717
      %v834 = vpop.f32.mrf.mxu0
      %v835 = vadd.f32 0.0, %v834
      %v836 = vpop.f32.mrf.mxu0
      %837 = vmatprep.mubr.f32.mxu0 0.0
      %838 = vmatmul.mubr.f32.gmra.mxu0 %v720
      %v839 = vpop.f32.mrf.mxu0
      %v840 = vadd.f32 0.0, %v839
      %v841 = vpop.f32.mrf.mxu0
      %842 = vmatprep.mubr.f32.mxu0 0.0
      %843 = vmatmul.mubr.f32.gmra.mxu0 %v723
      %v844 = vpop.f32.mrf.mxu0
      %v845 = vadd.f32 0.0, %v844
      %v846 = vpop.f32.mrf.mxu0
      %847 = vmatprep.mubr.f32.mxu0 0.0
      %848 = vmatmul.mubr.f32.gmra.mxu0 %v726
      %v849 = vpop.f32.mrf.mxu0
      %v850 = vadd.f32 0.0, %v849
      %v851 = vpop.f32.mrf.mxu0
      %852 = vmatprep.mubr.f32.mxu0 0.0
      %853 = vmatmul.mubr.f32.gmra.mxu0 %v729
      %v854 = vpop.f32.mrf.mxu0
      %v855 = vadd.f32 0.0, %v854
      %v856 = vpop.f32.mrf.mxu0
      %857 = vmatprep.mubr.f32.mxu0 0.0
      %858 = vmatmul.mubr.f32.gmra.mxu0 %v732
      %v859 = vpop.f32.mrf.mxu0
      %v860 = vadd.f32 0.0, %v859
      %v861 = vpop.f32.mrf.mxu0
      %862 = vmatprep.mubr.f32.mxu0 0.0
      %863 = vmatmul.mubr.f32.gmra.mxu0 %v735
      %v864 = vpop.f32.mrf.mxu0
      %v865 = vadd.f32 0.0, %v864
      %v866 = vpop.f32.mrf.mxu0
      %867 = vmatprep.mubr.f32.mxu0 0.0
      %868 = vmatmul.mubr.f32.gmra.mxu0 %v738
      %v869 = vpop.f32.mrf.mxu0
      %v870 = vadd.f32 0.0, %v869
      %v871 = vpop.f32.mrf.mxu0
      %872 = vmatprep.mubr.f32.mxu0 0.0
      %873 = vmatmul.mubr.f32.gmra.mxu0 %v741
      %v874 = vpop.f32.mrf.mxu0
      %v875 = vadd.f32 0.0, %v874
      %v876 = vpop.f32.mrf.mxu0
      %877 = vmatprep.mubr.f32.mxu0 0.0
      %878 = vmatmul.mubr.f32.gmra.mxu0 %v744
      %v879 = vpop.f32.mrf.mxu0
      %v880 = vadd.f32 0.0, %v879
      %v881 = vpop.f32.mrf.mxu0
      %882 = vmatprep.mubr.f32.mxu0 0.0
      %883 = vmatmul.mubr.f32.gmra.mxu0 %v747
      %v884 = vpop.f32.mrf.mxu0
      %v885 = vadd.f32 0.0, %v884
      %v886 = vpop.f32.mrf.mxu0
      %887 = vmatprep.mubr.f32.mxu0 0.0
      %888 = vmatmul.mubr.f32.gmra.mxu0 %v750
      %v889 = vpop.f32.mrf.mxu0
      %v890 = vadd.f32 0.0, %v889
      %v891 = vpop.f32.mrf.mxu0
      %892 = vmatprep.mubr.f32.mxu0 0.0
      %893 = vmatmul.mubr.f32.gmra.mxu0 %v753
      %v894 = vpop.f32.mrf.mxu0
      %v895 = vadd.f32 0.0, %v894
      %v896 = vpop.f32.mrf.mxu0
      %897 = vmatprep.mubr.f32.mxu0 0.0
      %898 = vmatmul.mubr.f32.gmra.mxu0 %v756
      %v899 = vpop.f32.mrf.mxu0
      %v900 = vadd.f32 0.0, %v899
      %v901 = vpop.f32.mrf.mxu0
      %902 = vmatprep.mubr.f32.mxu0 0.0
      %903 = vmatmul.mubr.f32.gmra.mxu0 %v759
      %v904 = vpop.f32.mrf.mxu0
      %v905 = vadd.f32 0.0, %v904
      %v906 = vpop.f32.mrf.mxu0
      %907 = vmatprep.mubr.f32.mxu0 0.0
      %908 = vmatmul.mubr.f32.gmra.mxu0 %v762
      %v909 = vpop.f32.mrf.mxu0
      %v910 = vadd.f32 0.0, %v909
      %v911 = vpop.f32.mrf.mxu0
      %912 = vdwg.mxu0
      %v914 = vsel %vm715, %v697, 0
      %v917 = vsel %vm715, %v698, 0
      %v920 = vsel %vm715, %v699, 0
      %v923 = vsel %vm715, %v700, 0
      %v926 = vsel %vm715, %v701, 0
      %v929 = vsel %vm715, %v702, 0
      %v932 = vsel %vm715, %v703, 0
      %v935 = vsel %vm715, %v704, 0
      %v938 = vsel %vm715, %v705, 0
      %v941 = vsel %vm715, %v706, 0
      %v944 = vsel %vm715, %v707, 0
      %v947 = vsel %vm715, %v708, 0
      %v950 = vsel %vm715, %v709, 0
      %v953 = vsel %vm715, %v710, 0
      %v956 = vsel %vm715, %v711, 0
      %v959 = vsel %vm715, %v712, 0
      %v962 = vsel %vm764, %v713, 0
      %964 = vmatprep.subr.mxu0 0.0
      %965 = vmatpush1.msra.mxu0 0.0
      %966 = vmatprep.subr.mxu0 0.0
      %967 = vmatpush1.msra.mxu0 0.0
      %968 = vmatprep.subr.mxu0 0.0
      %969 = vmatpush1.msra.mxu0 0.0
      %970 = vmatprep.subr.mxu0 0.0
      %971 = vmatpush1.msra.mxu0 0.0
      %972 = vmatprep.subr.mxu0 0.0
      %973 = vmatpush1.msra.mxu0 0.0
      %974 = vmatprep.subr.mxu0 0.0
      %975 = vmatpush1.msra.mxu0 0.0
      %976 = vmatprep.subr.mxu0 0.0
      %977 = vmatpush1.msra.mxu0 0.0
      %978 = vmatprep.subr.mxu0 0.0
      %979 = vmatpush1.msra.mxu0 0.0
      %980 = vmatprep.subr.mxu0 0.0
      %981 = vmatpush1.msra.mxu0 0.0
      %982 = vmatprep.subr.mxu0 0.0
      %983 = vmatpush1.msra.mxu0 0.0
      %984 = vmatprep.subr.mxu0 0.0
      %985 = vmatpush1.msra.mxu0 0.0
      %986 = vmatprep.subr.mxu0 0.0
      %987 = vmatpush1.msra.mxu0 0.0
      %988 = vmatprep.subr.mxu0 0.0
      %989 = vmatpush1.msra.mxu0 0.0
      %990 = vmatprep.subr.mxu0 0.0
      %991 = vmatpush1.msra.mxu0 0.0
      %992 = vmatprep.subr.mxu0 0.0
      %993 = vmatpush1.msra.mxu0 0.0
      %994 = vmatprep.subr.mxu0 0.0
      %995 = vmatpush1.msra.mxu0 %v962
      %996 = vmatprep.subr.mxu0 0.0
      %997 = vmatpush2.msra.mxu0 0.0
      %998 = vmatprep.subr.mxu0 0.0
      %999 = vmatpush2.msra.mxu0 0.0
      %1000 = vmatprep.subr.mxu0 0.0
      %1001 = vmatpush2.msra.mxu0 0.0
      %1002 = vmatprep.subr.mxu0 0.0
      %1003 = vmatpush2.msra.mxu0 0.0
      %1004 = vmatprep.subr.mxu0 0.0
      %1005 = vmatpush2.msra.mxu0 0.0
      %1006 = vmatprep.subr.mxu0 0.0
      %1007 = vmatpush2.msra.mxu0 0.0
      %1008 = vmatprep.subr.mxu0 0.0
      %1009 = vmatpush2.msra.mxu0 0.0
      %1010 = vmatprep.subr.mxu0 0.0
      %1011 = vmatpush2.msra.mxu0 0.0
      %1012 = vmatprep.subr.mxu0 0.0
      %1013 = vmatpush2.msra.mxu0 0.0
      %1014 = vmatprep.subr.mxu0 0.0
      %1015 = vmatpush2.msra.mxu0 0.0
      %1016 = vmatprep.subr.mxu0 0.0
      %1017 = vmatpush2.msra.mxu0 0.0
      %1018 = vmatprep.subr.mxu0 0.0
      %1019 = vmatpush2.msra.mxu0 0.0
      %1020 = vmatprep.subr.mxu0 0.0
      %1021 = vmatpush2.msra.mxu0 0.0
      %1022 = vmatprep.subr.mxu0 0.0
      %1023 = vmatpush2.msra.mxu0 0.0
      %1024 = vmatprep.subr.mxu0 0.0
      %1025 = vmatpush2.msra.mxu0 0.0
      %1026 = vmatprep.subr.mxu0 0.0
      %1027 = vmatpush2.msra.mxu0 0.0
      %1028 = vmatprep.mubr.f32.mxu0 0.0
      %1029 = vmatmul.mubr.f32.gmra.mxu0 %v914
      %v1030 = vpop.f32.mrf.mxu0
      %v1031 = vadd.f32 %v835, %v1030
      %v1032 = vpop.f32.mrf.mxu0
      %1033 = vmatprep.mubr.f32.mxu0 0.0
      %1034 = vmatmul.mubr.f32.gmra.mxu0 %v917
      %v1035 = vpop.f32.mrf.mxu0
      %v1036 = vadd.f32 %v840, %v1035
      %v1037 = vpop.f32.mrf.mxu0
      %1038 = vmatprep.mubr.f32.mxu0 0.0
      %1039 = vmatmul.mubr.f32.gmra.mxu0 %v920
      %v1040 = vpop.f32.mrf.mxu0
      %v1041 = vadd.f32 %v845, %v1040
      %v1042 = vpop.f32.mrf.mxu0
      %1043 = vmatprep.mubr.f32.mxu0 0.0
      %1044 = vmatmul.mubr.f32.gmra.mxu0 %v923
      %v1045 = vpop.f32.mrf.mxu0
      %v1046 = vadd.f32 %v850, %v1045
      %v1047 = vpop.f32.mrf.mxu0
      %1048 = vmatprep.mubr.f32.mxu0 0.0
      %1049 = vmatmul.mubr.f32.gmra.mxu0 %v926
      %v1050 = vpop.f32.mrf.mxu0
      %v1051 = vadd.f32 %v855, %v1050
      %v1052 = vpop.f32.mrf.mxu0
      %1053 = vmatprep.mubr.f32.mxu0 0.0
      %1054 = vmatmul.mubr.f32.gmra.mxu0 %v929
      %v1055 = vpop.f32.mrf.mxu0
      %v1056 = vadd.f32 %v860, %v1055
      %v1057 = vpop.f32.mrf.mxu0
      %1058 = vmatprep.mubr.f32.mxu0 0.0
      %1059 = vmatmul.mubr.f32.gmra.mxu0 %v932
      %v1060 = vpop.f32.mrf.mxu0
      %v1061 = vadd.f32 %v865, %v1060
      %v1062 = vpop.f32.mrf.mxu0
      %1063 = vmatprep.mubr.f32.mxu0 0.0
      %1064 = vmatmul.mubr.f32.gmra.mxu0 %v935
      %v1065 = vpop.f32.mrf.mxu0
      %v1066 = vadd.f32 %v870, %v1065
      %v1067 = vpop.f32.mrf.mxu0
      %1068 = vmatprep.mubr.f32.mxu0 0.0
      %1069 = vmatmul.mubr.f32.gmra.mxu0 %v938
      %v1070 = vpop.f32.mrf.mxu0
      %v1071 = vadd.f32 %v875, %v1070
      %v1072 = vpop.f32.mrf.mxu0
      %1073 = vmatprep.mubr.f32.mxu0 0.0
      %1074 = vmatmul.mubr.f32.gmra.mxu0 %v941
      %v1075 = vpop.f32.mrf.mxu0
      %v1076 = vadd.f32 %v880, %v1075
      %v1077 = vpop.f32.mrf.mxu0
      %1078 = vmatprep.mubr.f32.mxu0 0.0
      %1079 = vmatmul.mubr.f32.gmra.mxu0 %v944
      %v1080 = vpop.f32.mrf.mxu0
      %v1081 = vadd.f32 %v885, %v1080
      %v1082 = vpop.f32.mrf.mxu0
      %1083 = vmatprep.mubr.f32.mxu0 0.0
      %1084 = vmatmul.mubr.f32.gmra.mxu0 %v947
      %v1085 = vpop.f32.mrf.mxu0
      %v1086 = vadd.f32 %v890, %v1085
      %v1087 = vpop.f32.mrf.mxu0
      %1088 = vmatprep.mubr.f32.mxu0 0.0
      %1089 = vmatmul.mubr.f32.gmra.mxu0 %v950
      %v1090 = vpop.f32.mrf.mxu0
      %v1091 = vadd.f32 %v895, %v1090
      %v1092 = vpop.f32.mrf.mxu0
      %1093 = vmatprep.mubr.f32.mxu0 0.0
      %1094 = vmatmul.mubr.f32.gmra.mxu0 %v953
      %v1095 = vpop.f32.mrf.mxu0
      %v1096 = vadd.f32 %v900, %v1095
      %v1097 = vpop.f32.mrf.mxu0
      %1098 = vmatprep.mubr.f32.mxu0 0.0
      %1099 = vmatmul.mubr.f32.gmra.mxu0 %v956
      %v1100 = vpop.f32.mrf.mxu0
      %v1101 = vadd.f32 %v905, %v1100
      %v1102 = vpop.f32.mrf.mxu0
      %1103 = vmatprep.mubr.f32.mxu0 0.0
      %1104 = vmatmul.mubr.f32.gmra.mxu0 %v959
      %v1105 = vpop.f32.mrf.mxu0
      %v1106 = vadd.f32 %v910, %v1105
      %v1107 = vpop.f32.mrf.mxu0
      %1108 = vdwg.mxu0
      %v1109 = vld [vmem:[%s4] sm:$0x1]
      %v1111 = vlaneseq
      %v1112 = vshrl.u32 %v1111, 7
      %v1113 = vsub.s32 0, %v1112
      %v1114 = vrot.slane %v1109, %v1113
      %v1116 = vadd.f32 %v1031, %v1114
      %v1117 = vadd.f32 %v1036, %v1114
      %v1118 = vadd.f32 %v1041, %v1114
      %v1119 = vadd.f32 %v1046, %v1114
      %v1120 = vadd.f32 %v1051, %v1114
      %v1121 = vadd.f32 %v1056, %v1114
      %v1122 = vadd.f32 %v1061, %v1114
      %v1123 = vadd.f32 %v1066, %v1114
      %v1124 = vadd.f32 %v1071, %v1114
      %v1125 = vadd.f32 %v1076, %v1114
      %v1126 = vadd.f32 %v1081, %v1114
      %v1127 = vadd.f32 %v1086, %v1114
      %v1128 = vadd.f32 %v1091, %v1114
      %v1129 = vadd.f32 %v1096, %v1114
      %v1130 = vadd.f32 %v1101, %v1114
      %v1131 = vadd.f32 %v1106, %v1114
      %vm1132 = vcmask 64512
      %1133 = vst.msk [vmem:[%s248] sm:$0xff] %vm1132, %v1116
      %1134 = vst.msk [vmem:[%s248 + $0x8] sm:$0xff] %vm1132, %v1117
      %1135 = vst.msk [vmem:[%s248 + $0x10] sm:$0xff] %vm1132, %v1118
      %1136 = vst.msk [vmem:[%s248 + $0x18] sm:$0xff] %vm1132, %v1119
      %1137 = vst.msk [vmem:[%s248 + $0x20] sm:$0xff] %vm1132, %v1120
      %1138 = vst.msk [vmem:[%s248 + $0x28] sm:$0xff] %vm1132, %v1121
      %1139 = vst.msk [vmem:[%s248 + $0x30] sm:$0xff] %vm1132, %v1122
      %1140 = vst.msk [vmem:[%s248 + $0x38] sm:$0xff] %vm1132, %v1123
      %1141 = vst.msk [vmem:[%s248 + $0x40] sm:$0xff] %vm1132, %v1124
      %1142 = vst.msk [vmem:[%s248 + $0x48] sm:$0xff] %vm1132, %v1125
      %1143 = vst.msk [vmem:[%s248 + $0x50] sm:$0xff] %vm1132, %v1126
      %1144 = vst.msk [vmem:[%s248 + $0x58] sm:$0xff] %vm1132, %v1127
      %1145 = vst.msk [vmem:[%s248 + $0x60] sm:$0xff] %vm1132, %v1128
      %1146 = vst.msk [vmem:[%s248 + $0x68] sm:$0xff] %vm1132, %v1129
      %1147 = vst.msk [vmem:[%s248 + $0x70] sm:$0xff] %vm1132, %v1130
      %1148 = vst.msk [vmem:[%s248 + $0x78] sm:$0xff] %vm1132, %v1131
      %s1149 = smul.u32 8, %s21
      %p1150 = scmp.lt.s32.totalorder %s20, 1
      %s1151 = scalar_select %p1150, %s20, 1
      %p1152 = scmp.lt.s32.totalorder %s1149, 15
      %s1153 = scalar_select %p1152, %s1149, 15
      %s1154 = smul.addr %s1153, 2
      %s1155 = smul.addr %s1151, 32
      %s1156 = sadd.s32 %s1154, %s1155
      %s1157 = smul.addr %s1156, 8
      %s1158 = scalar_lea.vmem %s5, %s1157
      // Predicated region
      $region41: #{depthwise_conv_forward.1} parent=39 // pred_check
        %p1159 = pneg %p158
      $region42: #{depthwise_conv_forward.1} parent=39 // pred_check_branch
        %1161 = sbr.rel (%p1159) target = $region44
      $region43: #{depthwise_conv_forward.1} parent=39 // pred_region
        %s1162 = smul.u32 8, %s21
      $region44: #{depthwise_conv_forward.1} parent=39 // pred_fallthru
        _
    $region40: #{depthwise_conv_forward.1} parent=5 // pred_fallthru
      _
    %p1163 = scmp.le.s32.totalorder 2, %s11
    // Predicated region
    $region45: #{depthwise_conv_forward.1} parent=5 // pred_check
      %p1164 = pneg %p1163
    $region46: #{depthwise_conv_forward.1} parent=5 // pred_check_branch
      %1166 = sbr.rel (%p1164) target = $region48
    $region47: #{depthwise_conv_forward.1} parent=5 // pred_region
      %s1167 = ssub.s32 %s11, 2
      // Predicated region
      $region49: #{depthwise_conv_forward.1} parent=47 // pred_check
        %p1168 = pneg %p164
      $region50: #{depthwise_conv_forward.1} parent=47 // pred_check_branch
        %1170 = sbr.rel (%p1168) target = $region52
      $region51: #{depthwise_conv_forward.1} parent=47 // pred_region
        %s1171 = smul.u32 8, %s23
        %p1172 = scmp.lt.s32.totalorder %s22, 1
        %s1173 = scalar_select %p1172, %s22, 1
        %p1174 = scmp.lt.s32.totalorder %s1171, 15
        %s1175 = scalar_select %p1174, %s1171, 15
        %s1176 = smul.addr %s1175, 2
        %s1177 = smul.addr %s1173, 32
        %s1178 = sadd.s32 %s1176, %s1177
        %s1179 = smul.addr %s1178, 8
        %s1180 = scalar_lea.vmem %s5, %s1179
      $region52: #{depthwise_conv_forward.1} parent=47 // pred_fallthru
        _
    $region48: #{depthwise_conv_forward.1} parent=5 // pred_fallthru
      _
  $region6: #{depthwise_conv_forward.1} parent=0 // loop_footer
    %s15 = sadd.s32 1, %s11
  $region7: #{depthwise_conv_forward.1} parent=0 // loop_footer_branch
    %10 = sbr.rel target = $region3
  $region8: #{depthwise_conv_forward.1} parent=0 // loop_exit
    _

</llo_original>
